<compile_context>
chip_gen: v7x
topology: tpu7x:2x2x1
jax: 0.10.0
libtpu: 0.0.40
codegen_flags: <defaults>
</compile_context>

<pallas_src>
import functools

import jax
import jax.numpy as jnp
from jax.experimental import pallas as pl
from jax.experimental.pallas import tpu as pltpu

_LANES = 128
_MAX_TILE_COLS = 2048   # 256 x 2048 x f32 = 2 MiB per input block
_EPS = 1e-10            # same eps LPIPS uses in normalize_tensor


def _direction_loss_kernel(w_ref, b_ref, f1_ref, f2_ref, out_ref, acc_ref, *,
                           n_valid_cols, tile_cols):
    j = pl.program_id(0)

    @pl.when(j == 0)
    def _():
        acc_ref[...] = jnp.zeros_like(acc_ref)

    w = w_ref[...]                                    # (3, C)
    b = b_ref[...].astype(jnp.float32)                # (3, 1)
    x1 = f1_ref[...]                                  # (C, TILE)
    x2 = f2_ref[...]

    # 1x1 conv == per-pixel channel matmul -> MXU, f32 accumulate.
    z1 = jnp.dot(w, x1, preferred_element_type=jnp.float32) + b      # (3, TILE)
    z2 = jnp.dot(w, x2, preferred_element_type=jnp.float32) + b

    # LPIPS-style distance on the projected maps: unit-normalize along the
    # channel axis, squared difference, summed over channels.
    n1 = z1 / (jnp.sqrt(jnp.sum(z1 * z1, axis=0, keepdims=True)) + _EPS)
    n2 = z2 / (jnp.sqrt(jnp.sum(z2 * z2, axis=0, keepdims=True)) + _EPS)
    d = jnp.sum((n1 - n2) ** 2, axis=0, keepdims=True)                # (1, TILE)

    # Mask columns past the true pixel count (handles the partial last tile
    # without any wrapper-side padding).
    col = j * tile_cols + jax.lax.broadcasted_iota(jnp.int32, (1, tile_cols), 1)
    acc_ref[...] += jnp.where(col < n_valid_cols, d, 0.0)

    @pl.when(j == pl.num_programs(0) - 1)
    def _():
        # Single cross-lane reduction, only at the very end.
        out_ref[0, 0] = jnp.sum(acc_ref[...]) * jnp.float32(1.0 / n_valid_cols)


def contrastive_loss_conv_direction(f1, f2, w, b):
    """Pallas equivalent of ContrastiveLoss_conv.forward (mode='direction')."""
    n, c, h, w_sp = f1.shape
    assert f2.shape == f1.shape
    assert w.shape[1] == c and b.shape == (w.shape[0],)
    m = n * h * w_sp

    # NCHW -> lane-dense [C, M] slabs (layout plumbing only, not compute).
    x1 = jnp.transpose(f1, (1, 0, 2, 3)).reshape(c, m)
    x2 = jnp.transpose(f2, (1, 0, 2, 3)).reshape(c, m)

    m_rounded = pl.cdiv(m, _LANES) * _LANES
    tile_cols = min(_MAX_TILE_COLS, m_rounded)
    num_tiles = pl.cdiv(m, tile_cols)

    kernel = functools.partial(_direction_loss_kernel,
                               n_valid_cols=m, tile_cols=tile_cols)

    out = pl.pallas_call(
        kernel,
        out_shape=jax.ShapeDtypeStruct((1, 1), jnp.float32),
        grid_spec=pltpu.PrefetchScalarGridSpec(
            num_scalar_prefetch=0,
            grid=(num_tiles,),
            in_specs=[
                pl.BlockSpec((w.shape[0], c), lambda j: (0, 0)),      # conv weight
                pl.BlockSpec((w.shape[0], 1), lambda j: (0, 0)),      # conv bias
                pl.BlockSpec((c, tile_cols), lambda j: (0, j)),       # f1 slab
                pl.BlockSpec((c, tile_cols), lambda j: (0, j)),       # f2 slab
            ],
            out_specs=pl.BlockSpec((1, 1), lambda j: (0, 0),
                                   memory_space=pltpu.SMEM),
            scratch_shapes=[pltpu.VMEM((1, tile_cols), jnp.float32)],
        ),
        compiler_params=pltpu.CompilerParams(
            dimension_semantics=("arbitrary",)),
    )(w, b.reshape(-1, 1), x1, x2)

    return out[0, 0]


def _reference(f1, f2, w, b):
    z1 = jnp.einsum("oc,nchw->nohw", w, f1) + b.reshape(1, -1, 1, 1)
    z2 = jnp.einsum("oc,nchw->nohw", w, f2) + b.reshape(1, -1, 1, 1)

    def unit(z):
        return z / (jnp.sqrt(jnp.sum(z * z, axis=1, keepdims=True)) + _EPS)

    d = jnp.sum((unit(z1) - unit(z2)) ** 2, axis=1)
    return jnp.mean(d)


if __name__ == "__main__":
    key = jax.random.PRNGKey(0)
    k1, k2, kw, kb = jax.random.split(key, 4)
    n, c, h, w_sp = 2, 256, 16, 16

    def bf16_grid(x):
        # Quantize test data to the bf16 grid so the MXU's default-precision
        # f32 matmul path is exact and the reference check can be tight.
        return x.astype(jnp.bfloat16).astype(jnp.float32)

    f1 = bf16_grid(jax.random.normal(k1, (n, c, h, w_sp), dtype=jnp.float32))
    f2 = bf16_grid(jax.random.normal(k2, (n, c, h, w_sp), dtype=jnp.float32))
    w = bf16_grid(0.05 * jax.random.normal(kw, (3, c), dtype=jnp.float32))
    b = bf16_grid(0.05 * jax.random.normal(kb, (3,), dtype=jnp.float32))

    loss = contrastive_loss_conv_direction(f1, f2, w, b)
    loss = jax.block_until_ready(loss)
    ref = _reference(f1, f2, w, b)

    if jnp.allclose(loss, ref, rtol=1e-4, atol=1e-5):
        print("KERNEL_OK")
    else:
        print("mismatch:", float(loss), float(ref))
</pallas_src>

<mosaic_0001>
module attributes {stable_mosaic.version = 11 : i64} {
  func.func @_direction_loss_kernel(%arg0: i32, %arg1: memref<3x256xf32, #tpu.memory_space<vmem>>, %arg2: memref<3x1xf32, #tpu.memory_space<vmem>>, %arg3: memref<256x512xf32, #tpu.memory_space<vmem>>, %arg4: memref<256x512xf32, #tpu.memory_space<vmem>>, %arg5: memref<1x1xf32, #tpu.memory_space<smem>>, %arg6: memref<1x512xf32, #tpu.memory_space<vmem>>) attributes {dimension_semantics = [#tpu.dimension_semantics<arbitrary>], iteration_bounds = array<i64: 1>, scalar_prefetch = 0 : i64, scratch_operands = 1 : i64, tpu.core_type = #tpu.core_type<tc>, window_params = [{pipeline_mode = #tpu.pipeline_mode<synchronous>, transform_indices = @transform_0, window_bounds = array<i64: 3, 256>}, {pipeline_mode = #tpu.pipeline_mode<synchronous>, transform_indices = @transform_1, window_bounds = array<i64: 3, 1>}, {transform_indices = @transform_2, window_bounds = array<i64: 256, 512>}, {transform_indices = @transform_3, window_bounds = array<i64: 256, 512>}, {transform_indices = @transform_4, window_bounds = array<i64: 1, 1>}]} {
    %c0_i32 = arith.constant 0 : i32
    %0 = arith.cmpi eq, %arg0, %c0_i32 : i32
    %1 = arith.extui %0 : i1 to i32
    %c0_i32_0 = arith.constant 0 : i32
    %2 = arith.cmpi ne, %1, %c0_i32_0 : i32
    scf.if %2 {
      %cst_22 = arith.constant 0.000000e+00 : f32
      %47 = vector.broadcast %cst_22 : f32 to vector<1x512xf32>
      %c0_23 = arith.constant 0 : index
      %c0_24 = arith.constant 0 : index
      %48 = vector.load %arg6[%c0_23, %c0_24] : memref<1x512xf32, #tpu.memory_space<vmem>>, vector<1x512xf32>
      tpu.vector_store %arg6[%c0_23, %c0_24], %47 {strides = array<i32>} : memref<1x512xf32, #tpu.memory_space<vmem>>, vector<1x512xf32>,
    } else {
    }
    %c0 = arith.constant 0 : index
    %c0_1 = arith.constant 0 : index
    %3 = vector.load %arg1[%c0, %c0_1] : memref<3x256xf32, #tpu.memory_space<vmem>>, vector<3x256xf32>
    %c0_2 = arith.constant 0 : index
    %c0_3 = arith.constant 0 : index
    %4 = vector.load %arg2[%c0_2, %c0_3] : memref<3x1xf32, #tpu.memory_space<vmem>>, vector<3x1xf32>
    %c0_4 = arith.constant 0 : index
    %c0_5 = arith.constant 0 : index
    %5 = vector.load %arg3[%c0_4, %c0_5] : memref<256x512xf32, #tpu.memory_space<vmem>>, vector<256x512xf32>
    %c0_6 = arith.constant 0 : index
    %c0_7 = arith.constant 0 : index
    %6 = vector.load %arg4[%c0_6, %c0_7] : memref<256x512xf32, #tpu.memory_space<vmem>>, vector<256x512xf32>
    %cst = arith.constant dense<0.000000e+00> : vector<3x512xf32>
    %7 = tpu.matmul %3, %5, %cst {dimension_numbers = #tpu.dot_dimension_numbers<[1], [0], [0], [1], [0, 0, 1, 1], [], []>} : vector<3x256xf32>, vector<256x512xf32>, vector<3x512xf32> -> vector<3x512xf32>
    %8 = vector.broadcast %4 : vector<3x1xf32> to vector<3x512xf32>
    %9 = arith.addf %7, %8 : vector<3x512xf32>
    %cst_8 = arith.constant dense<0.000000e+00> : vector<3x512xf32>
    %10 = tpu.matmul %3, %6, %cst_8 {dimension_numbers = #tpu.dot_dimension_numbers<[1], [0], [0], [1], [0, 0, 1, 1], [], []>} : vector<3x256xf32>, vector<256x512xf32>, vector<3x512xf32> -> vector<3x512xf32>
    %11 = vector.broadcast %4 : vector<3x1xf32> to vector<3x512xf32>
    %12 = arith.addf %10, %11 : vector<3x512xf32>
    %13 = arith.mulf %9, %9 : vector<3x512xf32>
    %cst_9 = arith.constant dense<0.000000e+00> : vector<512xf32>
    %14 = vector.multi_reduction <add>, %13, %cst_9 [0] : vector<3x512xf32> to vector<512xf32>
    %15 = vector.shape_cast %14 : vector<512xf32> to vector<1x512xf32>
    %16 = math.sqrt %15 : vector<1x512xf32>
    %cst_10 = arith.constant 1.000000e-10 : f32
    %17 = vector.broadcast %cst_10 : f32 to vector<1x512xf32>
    %18 = arith.addf %16, %17 : vector<1x512xf32>
    %19 = vector.broadcast %18 : vector<1x512xf32> to vector<3x512xf32>
    %20 = arith.divf %9, %19 : vector<3x512xf32>
    %21 = arith.mulf %12, %12 : vector<3x512xf32>
    %cst_11 = arith.constant dense<0.000000e+00> : vector<512xf32>
    %22 = vector.multi_reduction <add>, %21, %cst_11 [0] : vector<3x512xf32> to vector<512xf32>
    %23 = vector.shape_cast %22 : vector<512xf32> to vector<1x512xf32>
    %24 = math.sqrt %23 : vector<1x512xf32>
    %cst_12 = arith.constant 1.000000e-10 : f32
    %25 = vector.broadcast %cst_12 : f32 to vector<1x512xf32>
    %26 = arith.addf %24, %25 : vector<1x512xf32>
    %27 = vector.broadcast %26 : vector<1x512xf32> to vector<3x512xf32>
    %28 = arith.divf %12, %27 : vector<3x512xf32>
    %29 = arith.subf %20, %28 : vector<3x512xf32>
    %30 = arith.mulf %29, %29 : vector<3x512xf32>
    %cst_13 = arith.constant dense<0.000000e+00> : vector<512xf32>
    %31 = vector.multi_reduction <add>, %30, %cst_13 [0] : vector<3x512xf32> to vector<512xf32>
    %32 = vector.shape_cast %31 : vector<512xf32> to vector<1x512xf32>
    %c512_i32 = arith.constant 512 : i32
    %33 = arith.muli %arg0, %c512_i32 : i32
    %34 = tpu.iota {dimensions = array<i32: 1>} : vector<1x512xi32>
    %35 = vector.broadcast %33 : i32 to vector<1x512xi32>
    %36 = arith.addi %35, %34 : vector<1x512xi32>
    %c0_14 = arith.constant 0 : index
    %c0_15 = arith.constant 0 : index
    %37 = vector.load %arg6[%c0_14, %c0_15] : memref<1x512xf32, #tpu.memory_space<vmem>>, vector<1x512xf32>
    %c512_i32_16 = arith.constant 512 : i32
    %38 = vector.broadcast %c512_i32_16 : i32 to vector<1x512xi32>
    %39 = arith.cmpi slt, %36, %38 : vector<1x512xi32>
    %cst_17 = arith.constant 0.000000e+00 : f32
    %40 = vector.broadcast %cst_17 : f32 to vector<1x512xf32>
    %41 = arith.select %39, %32, %40 : vector<1x512xi1>, vector<1x512xf32>
    %42 = arith.addf %37, %41 : vector<1x512xf32>
    %c0_18 = arith.constant 0 : index
    %c0_19 = arith.constant 0 : index
    %43 = vector.load %arg6[%c0_18, %c0_19] : memref<1x512xf32, #tpu.memory_space<vmem>>, vector<1x512xf32>
    tpu.vector_store %arg6[%c0_18, %c0_19], %42 {strides = array<i32>} : memref<1x512xf32, #tpu.memory_space<vmem>>, vector<1x512xf32>,
    %c0_i32_20 = arith.constant 0 : i32
    %44 = arith.cmpi eq, %arg0, %c0_i32_20 : i32
    %45 = arith.extui %44 : i1 to i32
    %c0_i32_21 = arith.constant 0 : i32
    %46 = arith.cmpi ne, %45, %c0_i32_21 : i32
    scf.if %46 {
      %c0_22 = arith.constant 0 : index
      %c0_23 = arith.constant 0 : index
      %47 = vector.load %arg6[%c0_22, %c0_23] : memref<1x512xf32, #tpu.memory_space<vmem>>, vector<1x512xf32>
      %48 = vector.shape_cast %47 : vector<1x512xf32> to vector<1x1x512xf32>
      %cst_24 = arith.constant dense<0.000000e+00> : vector<1xf32>
      %49 = vector.multi_reduction <add>, %48, %cst_24 [1, 2] : vector<1x1x512xf32> to vector<1xf32>
      %50 = vector.shape_cast %49 : vector<1xf32> to vector<1x1x1xf32>
      %51 = vector.extract %50[0, 0, 0] : f32 from vector<1x1x1xf32>
      %cst_25 = arith.constant 0.001953125 : f32
      %52 = arith.mulf %51, %cst_25 : f32
      %c0_26 = arith.constant 0 : index
      %c0_27 = arith.constant 0 : index
      %53 = memref.load %arg5[%c0_26, %c0_27] : memref<1x1xf32, #tpu.memory_space<smem>>
      memref.store %52, %arg5[%c0_26, %c0_27] : memref<1x1xf32, #tpu.memory_space<smem>>
    } else {
    }
    return
  }
  func.func @transform_0(%arg0: i32) -> (i32, i32) {
    %c0_i32 = arith.constant 0 : i32
    %c0_i32_0 = arith.constant 0 : i32
    %c0_i32_1 = arith.constant 0 : i32
    return %c0_i32, %c0_i32_0 : i32, i32
  }
  func.func @transform_1(%arg0: i32) -> (i32, i32) {
    %c0_i32 = arith.constant 0 : i32
    %c0_i32_0 = arith.constant 0 : i32
    %c0_i32_1 = arith.constant 0 : i32
    return %c0_i32, %c0_i32_0 : i32, i32
  }
  func.func @transform_2(%arg0: i32) -> (i32, i32) {
    %c0_i32 = arith.constant 0 : i32
    %c0_i32_0 = arith.constant 0 : i32
    return %c0_i32, %arg0 : i32, i32
  }
  func.func @transform_3(%arg0: i32) -> (i32, i32) {
    %c0_i32 = arith.constant 0 : i32
    %c0_i32_0 = arith.constant 0 : i32
    return %c0_i32, %arg0 : i32, i32
  }
  func.func @transform_4(%arg0: i32) -> (i32, i32) {
    %c0_i32 = arith.constant 0 : i32
    %c0_i32_0 = arith.constant 0 : i32
    %c0_i32_1 = arith.constant 0 : i32
    return %c0_i32, %c0_i32_0 : i32, i32
  }
}

</mosaic_0001>

<llo_original>
// kernel: tpu_custom_call.1
$region0: #{tpu_custom_call.1}
  #allocation0 [shape = 'u32[]', space=smem, size = 0x4, offset = 0x4, fixed_abs, tag = 'smem constant byte address 0x4 - core index']
  #allocation1 [shape = 'u32[144,128]{1,0:T(1,128)}', space=vmem, size = 0x12000, scoped, tag = 'internal scratch']
  #allocation2 [shape = 'f32[1,512]{1,0:T(1,128)}', space=vmem, size = 0x800, scoped, tag = 'scratch operand']
  %s0 = inlined_call_operand.hbm [shape: f32[3,256], index: 0, kind: input, shape index: {}]
  %s1 = inlined_call_operand.vmem [shape: f32[3,1], index: 1, kind: input, shape index: {}]
  %s2 = inlined_call_operand.hbm [shape: f32[256,512], index: 2, kind: input, shape index: {}]
  %s3 = inlined_call_operand.hbm [shape: f32[256,512], index: 3, kind: input, shape index: {}]
  %s4 = inlined_call_operand.hbm [shape: f32[1,1], index: 4, kind: output, shape index: {}]
  %s5 = sld [smem:[#allocation0]]
  $region46: #{tpu_custom_call.1} parent=0
    _
  %s7 = ssub.s32 1, %s5
  %s8 = scalar_select 0, %s7, %s5
  $region1: #{tpu_custom_call.1} parent=0
    #allocation3 [shape = 'u8[4096]{0}', space=vmem, size = 0x1000, scoped, tag = 'input window, operand 0, single buffered']
    #allocation4 [shape = 's32[1]{0}', space=sflag, size = 0x4, scoped, tag = 'scoped memory for tpu_custom_call.1']
    #allocation5 [shape = 's32[1]{0}', space=sflag, size = 0x4, scoped, tag = 'scoped memory for tpu_custom_call.1']
    #allocation6 [shape = 'u8[524288]{0}', space=vmem, size = 0x80000, scoped, tag = 'input window, operand 2, single buffered']
    #allocation7 [shape = 's32[1]{0}', space=sflag, size = 0x4, scoped, tag = 'scoped memory for tpu_custom_call.1']
    #allocation8 [shape = 'u8[524288]{0}', space=vmem, size = 0x80000, scoped, tag = 'input window, operand 3, single buffered']
    #allocation9 [shape = 'u8[512]{0}', space=smem, size = 0x200, scoped, tag = 'output window, operand 0, single buffered']
    %9 = vsyncpa [#allocation4], 0
    %10 = vsyncpa [#allocation7], 0
    %11 = vsyncpa [#allocation5], 0
    // Predicated region
    $region2: #{tpu_custom_call.1} parent=1 // pred_check
      _
    $region3: #{tpu_custom_call.1} parent=1 // pred_check_branch
      %13 = sbr.rel (0) target = $region5
    $region4: #{tpu_custom_call.1} parent=1 // pred_region
      %s15 = ssub.s32 128, 128
      %16 = vsyncadd [#allocation4], %s15
      %s18 = sshll.u32 [#allocation3], 4
      %s19 = int_to_ptr.vmem [resolvable:$true] %s18
      %21 = dma.hbm_to_vmem [thread:$0]  %s0, 128, %s19, [#allocation4]
    $region5: #{tpu_custom_call.1} parent=1 // pred_fallthru
      _
    // Predicated region
    $region6: #{tpu_custom_call.1} parent=1 // pred_check
      _
    $region7: #{tpu_custom_call.1} parent=1 // pred_check_branch
      %23 = sbr.rel (0) target = $region9
    $region8: #{tpu_custom_call.1} parent=1 // pred_region
      _
    $region9: #{tpu_custom_call.1} parent=1 // pred_fallthru
      _
    // Predicated region
    $region10: #{tpu_custom_call.1} parent=1 // pred_check
      _
    $region11: #{tpu_custom_call.1} parent=1 // pred_check_branch
      %25 = sbr.rel (0) target = $region13
    $region12: #{tpu_custom_call.1} parent=1 // pred_region
      %s27 = ssub.s32 16384, 16384
      %28 = vsyncadd [#allocation7], %s27
      %s29 = sshll.u32 [#allocation6], 4
      %s30 = int_to_ptr.vmem [resolvable:$true] %s29
      %35 = dma.hbm_to_vmem [thread:$0]  %s2, 16384, %s30, [#allocation7], 512, 512, 32
    $region13: #{tpu_custom_call.1} parent=1 // pred_fallthru
      _
    // Predicated region
    $region14: #{tpu_custom_call.1} parent=1 // pred_check
      _
    $region15: #{tpu_custom_call.1} parent=1 // pred_check_branch
      %37 = sbr.rel (0) target = $region17
    $region16: #{tpu_custom_call.1} parent=1 // pred_region
      %s39 = ssub.s32 16384, 16384
      %40 = vsyncadd [#allocation7], %s39
      %s41 = sshll.u32 [#allocation8], 4
      %s42 = int_to_ptr.vmem [resolvable:$true] %s41
      %47 = dma.hbm_to_vmem [thread:$0]  %s3, 16384, %s42, [#allocation7], 512, 512, 32
    $region17: #{tpu_custom_call.1} parent=1 // pred_fallthru
      _
    // Predicated region
    $region18: #{tpu_custom_call.1} parent=1 // pred_check
      _
    $region19: #{tpu_custom_call.1} parent=1 // pred_check_branch
      %49 = sbr.rel (0) target = $region21
    $region20: #{tpu_custom_call.1} parent=1 // pred_region
      %50 = dma.done [#allocation4], 128
    $region21: #{tpu_custom_call.1} parent=1 // pred_fallthru
      _
    // Predicated region
    $region22: #{tpu_custom_call.1} parent=1 // pred_check
      _
    $region23: #{tpu_custom_call.1} parent=1 // pred_check_branch
      %52 = sbr.rel (0) target = $region25
    $region24: #{tpu_custom_call.1} parent=1 // pred_region
      %53 = dma.done [#allocation7], 16384
    $region25: #{tpu_custom_call.1} parent=1 // pred_fallthru
      _
    // Predicated region
    $region26: #{tpu_custom_call.1} parent=1 // pred_check
      _
    $region27: #{tpu_custom_call.1} parent=1 // pred_check_branch
      %55 = sbr.rel (0) target = $region29
    $region28: #{tpu_custom_call.1} parent=1 // pred_region
      %56 = dma.done [#allocation7], 16384
    $region29: #{tpu_custom_call.1} parent=1 // pred_fallthru
      _
    %p57 = scmp.eq.s32.totalorder 0, 0
    // Predicated region
    $region30: #{tpu_custom_call.1} parent=1 // pred_check
      %p58 = pneg %p57
    $region31: #{tpu_custom_call.1} parent=1 // pred_check_branch
      %60 = sbr.rel (%p58) target = $region33
    $region32: #{tpu_custom_call.1} parent=1 // pred_region
      %v61 = vlaneseq
      %vm62 = vcmp.ge.s32.totalorder %v61, 0
      %vm63 = vcmp.lt.s32.totalorder %v61, 512
      %vm64 = vmand %vm62, %vm63
      %65 = vst.msk [vmem:[#allocation2] sm:$0xf] %vm64, 0.0
    $region33: #{tpu_custom_call.1} parent=1 // pred_fallthru
      _
    %v66 = vld [vmem:[#allocation3] sm:$0x77]
    %v67 = vld [vmem:[%s1] sm:$0x7]
    %v68 = vld [vmem:[#allocation6] sm:$0xff]
    %v69 = vld [vmem:[#allocation6 + $0x8] sm:$0xff]
    %v70 = vld [vmem:[#allocation6 + $0x10] sm:$0xff]
    %v71 = vld [vmem:[#allocation6 + $0x18] sm:$0xff]
    %v72 = vld [vmem:[#allocation6 + $0x20] sm:$0xff]
    %v73 = vld [vmem:[#allocation6 + $0x28] sm:$0xff]
    %v74 = vld [vmem:[#allocation6 + $0x30] sm:$0xff]
    %v75 = vld [vmem:[#allocation6 + $0x38] sm:$0xff]
    %v76 = vld [vmem:[#allocation6 + $0x40] sm:$0xff]
    %v77 = vld [vmem:[#allocation6 + $0x48] sm:$0xff]
    %v78 = vld [vmem:[#allocation6 + $0x50] sm:$0xff]
    %v79 = vld [vmem:[#allocation6 + $0x58] sm:$0xff]
    %v80 = vld [vmem:[#allocation6 + $0x60] sm:$0xff]
    %v81 = vld [vmem:[#allocation6 + $0x68] sm:$0xff]
    %v82 = vld [vmem:[#allocation6 + $0x70] sm:$0xff]
    %v83 = vld [vmem:[#allocation6 + $0x78] sm:$0xff]
    %v84 = vld [vmem:[#allocation6 + $0x80] sm:$0xff]
    %v85 = vld [vmem:[#allocation6 + $0x88] sm:$0xff]
    %v86 = vld [vmem:[#allocation6 + $0x90] sm:$0xff]
    %v87 = vld [vmem:[#allocation6 + $0x98] sm:$0xff]
    %v88 = vld [vmem:[#allocation6 + $0xa0] sm:$0xff]
    %v89 = vld [vmem:[#allocation6 + $0xa8] sm:$0xff]
    %v90 = vld [vmem:[#allocation6 + $0xb0] sm:$0xff]
    %v91 = vld [vmem:[#allocation6 + $0xb8] sm:$0xff]
    %v92 = vld [vmem:[#allocation6 + $0xc0] sm:$0xff]
    %v93 = vld [vmem:[#allocation6 + $0xc8] sm:$0xff]
    %v94 = vld [vmem:[#allocation6 + $0xd0] sm:$0xff]
    %v95 = vld [vmem:[#allocation6 + $0xd8] sm:$0xff]
    %v96 = vld [vmem:[#allocation6 + $0xe0] sm:$0xff]
    %v97 = vld [vmem:[#allocation6 + $0xe8] sm:$0xff]
    %v98 = vld [vmem:[#allocation6 + $0xf0] sm:$0xff]
    %v99 = vld [vmem:[#allocation6 + $0xf8] sm:$0xff]
    %v100 = vld [vmem:[#allocation6 + $0x100] sm:$0xff]
    %v101 = vld [vmem:[#allocation6 + $0x108] sm:$0xff]
    %v102 = vld [vmem:[#allocation6 + $0x110] sm:$0xff]
    %v103 = vld [vmem:[#allocation6 + $0x118] sm:$0xff]
    %v104 = vld [vmem:[#allocation6 + $0x120] sm:$0xff]
    %v105 = vld [vmem:[#allocation6 + $0x128] sm:$0xff]
    %v106 = vld [vmem:[#allocation6 + $0x130] sm:$0xff]
    %v107 = vld [vmem:[#allocation6 + $0x138] sm:$0xff]
    %v108 = vld [vmem:[#allocation6 + $0x140] sm:$0xff]
    %v109 = vld [vmem:[#allocation6 + $0x148] sm:$0xff]
    %v110 = vld [vmem:[#allocation6 + $0x150] sm:$0xff]
    %v111 = vld [vmem:[#allocation6 + $0x158] sm:$0xff]
    %v112 = vld [vmem:[#allocation6 + $0x160] sm:$0xff]
    %v113 = vld [vmem:[#allocation6 + $0x168] sm:$0xff]
    %v114 = vld [vmem:[#allocation6 + $0x170] sm:$0xff]
    %v115 = vld [vmem:[#allocation6 + $0x178] sm:$0xff]
    %v116 = vld [vmem:[#allocation6 + $0x180] sm:$0xff]
    %v117 = vld [vmem:[#allocation6 + $0x188] sm:$0xff]
    %v118 = vld [vmem:[#allocation6 + $0x190] sm:$0xff]
    %v119 = vld [vmem:[#allocation6 + $0x198] sm:$0xff]
    %v120 = vld [vmem:[#allocation6 + $0x1a0] sm:$0xff]
    %v121 = vld [vmem:[#allocation6 + $0x1a8] sm:$0xff]
    %v122 = vld [vmem:[#allocation6 + $0x1b0] sm:$0xff]
    %v123 = vld [vmem:[#allocation6 + $0x1b8] sm:$0xff]
    %v124 = vld [vmem:[#allocation6 + $0x1c0] sm:$0xff]
    %v125 = vld [vmem:[#allocation6 + $0x1c8] sm:$0xff]
    %v126 = vld [vmem:[#allocation6 + $0x1d0] sm:$0xff]
    %v127 = vld [vmem:[#allocation6 + $0x1d8] sm:$0xff]
    %v128 = vld [vmem:[#allocation6 + $0x1e0] sm:$0xff]
    %v129 = vld [vmem:[#allocation6 + $0x1e8] sm:$0xff]
    %v130 = vld [vmem:[#allocation6 + $0x1f0] sm:$0xff]
    %v131 = vld [vmem:[#allocation6 + $0x1f8] sm:$0xff]
    %v132 = vld [vmem:[#allocation6 + $0x200] sm:$0xff]
    %v133 = vld [vmem:[#allocation6 + $0x208] sm:$0xff]
    %v134 = vld [vmem:[#allocation6 + $0x210] sm:$0xff]
    %v135 = vld [vmem:[#allocation6 + $0x218] sm:$0xff]
    %v136 = vld [vmem:[#allocation6 + $0x220] sm:$0xff]
    %v137 = vld [vmem:[#allocation6 + $0x228] sm:$0xff]
    %v138 = vld [vmem:[#allocation6 + $0x230] sm:$0xff]
    %v139 = vld [vmem:[#allocation6 + $0x238] sm:$0xff]
    %v140 = vld [vmem:[#allocation6 + $0x240] sm:$0xff]
    %v141 = vld [vmem:[#allocation6 + $0x248] sm:$0xff]
    %v142 = vld [vmem:[#allocation6 + $0x250] sm:$0xff]
    %v143 = vld [vmem:[#allocation6 + $0x258] sm:$0xff]
    %v144 = vld [vmem:[#allocation6 + $0x260] sm:$0xff]
    %v145 = vld [vmem:[#allocation6 + $0x268] sm:$0xff]
    %v146 = vld [vmem:[#allocation6 + $0x270] sm:$0xff]
    %v147 = vld [vmem:[#allocation6 + $0x278] sm:$0xff]
    %v148 = vld [vmem:[#allocation6 + $0x280] sm:$0xff]
    %v149 = vld [vmem:[#allocation6 + $0x288] sm:$0xff]
    %v150 = vld [vmem:[#allocation6 + $0x290] sm:$0xff]
    %v151 = vld [vmem:[#allocation6 + $0x298] sm:$0xff]
    %v152 = vld [vmem:[#allocation6 + $0x2a0] sm:$0xff]
    %v153 = vld [vmem:[#allocation6 + $0x2a8] sm:$0xff]
    %v154 = vld [vmem:[#allocation6 + $0x2b0] sm:$0xff]
    %v155 = vld [vmem:[#allocation6 + $0x2b8] sm:$0xff]
    %v156 = vld [vmem:[#allocation6 + $0x2c0] sm:$0xff]
    %v157 = vld [vmem:[#allocation6 + $0x2c8] sm:$0xff]
    %v158 = vld [vmem:[#allocation6 + $0x2d0] sm:$0xff]
    %v159 = vld [vmem:[#allocation6 + $0x2d8] sm:$0xff]
    %v160 = vld [vmem:[#allocation6 + $0x2e0] sm:$0xff]
    %v161 = vld [vmem:[#allocation6 + $0x2e8] sm:$0xff]
    %v162 = vld [vmem:[#allocation6 + $0x2f0] sm:$0xff]
    %v163 = vld [vmem:[#allocation6 + $0x2f8] sm:$0xff]
    %v164 = vld [vmem:[#allocation6 + $0x300] sm:$0xff]
    %v165 = vld [vmem:[#allocation6 + $0x308] sm:$0xff]
    %v166 = vld [vmem:[#allocation6 + $0x310] sm:$0xff]
    %v167 = vld [vmem:[#allocation6 + $0x318] sm:$0xff]
    %v168 = vld [vmem:[#allocation6 + $0x320] sm:$0xff]
    %v169 = vld [vmem:[#allocation6 + $0x328] sm:$0xff]
    %v170 = vld [vmem:[#allocation6 + $0x330] sm:$0xff]
    %v171 = vld [vmem:[#allocation6 + $0x338] sm:$0xff]
    %v172 = vld [vmem:[#allocation6 + $0x340] sm:$0xff]
    %v173 = vld [vmem:[#allocation6 + $0x348] sm:$0xff]
    %v174 = vld [vmem:[#allocation6 + $0x350] sm:$0xff]
    %v175 = vld [vmem:[#allocation6 + $0x358] sm:$0xff]
    %v176 = vld [vmem:[#allocation6 + $0x360] sm:$0xff]
    %v177 = vld [vmem:[#allocation6 + $0x368] sm:$0xff]
    %v178 = vld [vmem:[#allocation6 + $0x370] sm:$0xff]
    %v179 = vld [vmem:[#allocation6 + $0x378] sm:$0xff]
    %v180 = vld [vmem:[#allocation6 + $0x380] sm:$0xff]
    %v181 = vld [vmem:[#allocation6 + $0x388] sm:$0xff]
    %v182 = vld [vmem:[#allocation6 + $0x390] sm:$0xff]
    %v183 = vld [vmem:[#allocation6 + $0x398] sm:$0xff]
    %v184 = vld [vmem:[#allocation6 + $0x3a0] sm:$0xff]
    %v185 = vld [vmem:[#allocation6 + $0x3a8] sm:$0xff]
    %v186 = vld [vmem:[#allocation6 + $0x3b0] sm:$0xff]
    %v187 = vld [vmem:[#allocation6 + $0x3b8] sm:$0xff]
    %v188 = vld [vmem:[#allocation6 + $0x3c0] sm:$0xff]
    %v189 = vld [vmem:[#allocation6 + $0x3c8] sm:$0xff]
    %v190 = vld [vmem:[#allocation6 + $0x3d0] sm:$0xff]
    %v191 = vld [vmem:[#allocation6 + $0x3d8] sm:$0xff]
    %v192 = vld [vmem:[#allocation6 + $0x3e0] sm:$0xff]
    %v193 = vld [vmem:[#allocation6 + $0x3e8] sm:$0xff]
    %v194 = vld [vmem:[#allocation6 + $0x3f0] sm:$0xff]
    %v195 = vld [vmem:[#allocation6 + $0x3f8] sm:$0xff]
    %v196 = vld [vmem:[#allocation8] sm:$0xff]
    %v197 = vld [vmem:[#allocation8 + $0x8] sm:$0xff]
    %v198 = vld [vmem:[#allocation8 + $0x10] sm:$0xff]
    %v199 = vld [vmem:[#allocation8 + $0x18] sm:$0xff]
    %v200 = vld [vmem:[#allocation8 + $0x20] sm:$0xff]
    %v201 = vld [vmem:[#allocation8 + $0x28] sm:$0xff]
    %v202 = vld [vmem:[#allocation8 + $0x30] sm:$0xff]
    %v203 = vld [vmem:[#allocation8 + $0x38] sm:$0xff]
    %v204 = vld [vmem:[#allocation8 + $0x40] sm:$0xff]
    %v205 = vld [vmem:[#allocation8 + $0x48] sm:$0xff]
    %v206 = vld [vmem:[#allocation8 + $0x50] sm:$0xff]
    %v207 = vld [vmem:[#allocation8 + $0x58] sm:$0xff]
    %v208 = vld [vmem:[#allocation8 + $0x60] sm:$0xff]
    %v209 = vld [vmem:[#allocation8 + $0x68] sm:$0xff]
    %v210 = vld [vmem:[#allocation8 + $0x70] sm:$0xff]
    %v211 = vld [vmem:[#allocation8 + $0x78] sm:$0xff]
    %v212 = vld [vmem:[#allocation8 + $0x80] sm:$0xff]
    %v213 = vld [vmem:[#allocation8 + $0x88] sm:$0xff]
    %v214 = vld [vmem:[#allocation8 + $0x90] sm:$0xff]
    %v215 = vld [vmem:[#allocation8 + $0x98] sm:$0xff]
    %v216 = vld [vmem:[#allocation8 + $0xa0] sm:$0xff]
    %v217 = vld [vmem:[#allocation8 + $0xa8] sm:$0xff]
    %v218 = vld [vmem:[#allocation8 + $0xb0] sm:$0xff]
    %v219 = vld [vmem:[#allocation8 + $0xb8] sm:$0xff]
    %v220 = vld [vmem:[#allocation8 + $0xc0] sm:$0xff]
    %v221 = vld [vmem:[#allocation8 + $0xc8] sm:$0xff]
    %v222 = vld [vmem:[#allocation8 + $0xd0] sm:$0xff]
    %v223 = vld [vmem:[#allocation8 + $0xd8] sm:$0xff]
    %v224 = vld [vmem:[#allocation8 + $0xe0] sm:$0xff]
    %v225 = vld [vmem:[#allocation8 + $0xe8] sm:$0xff]
    %v226 = vld [vmem:[#allocation8 + $0xf0] sm:$0xff]
    %v227 = vld [vmem:[#allocation8 + $0xf8] sm:$0xff]
    %v228 = vld [vmem:[#allocation8 + $0x100] sm:$0xff]
    %v229 = vld [vmem:[#allocation8 + $0x108] sm:$0xff]
    %v230 = vld [vmem:[#allocation8 + $0x110] sm:$0xff]
    %v231 = vld [vmem:[#allocation8 + $0x118] sm:$0xff]
    %v232 = vld [vmem:[#allocation8 + $0x120] sm:$0xff]
    %v233 = vld [vmem:[#allocation8 + $0x128] sm:$0xff]
    %v234 = vld [vmem:[#allocation8 + $0x130] sm:$0xff]
    %v235 = vld [vmem:[#allocation8 + $0x138] sm:$0xff]
    %v236 = vld [vmem:[#allocation8 + $0x140] sm:$0xff]
    %v237 = vld [vmem:[#allocation8 + $0x148] sm:$0xff]
    %v238 = vld [vmem:[#allocation8 + $0x150] sm:$0xff]
    %v239 = vld [vmem:[#allocation8 + $0x158] sm:$0xff]
    %v240 = vld [vmem:[#allocation8 + $0x160] sm:$0xff]
    %v241 = vld [vmem:[#allocation8 + $0x168] sm:$0xff]
    %v242 = vld [vmem:[#allocation8 + $0x170] sm:$0xff]
    %v243 = vld [vmem:[#allocation8 + $0x178] sm:$0xff]
    %v244 = vld [vmem:[#allocation8 + $0x180] sm:$0xff]
    %v245 = vld [vmem:[#allocation8 + $0x188] sm:$0xff]
    %v246 = vld [vmem:[#allocation8 + $0x190] sm:$0xff]
    %v247 = vld [vmem:[#allocation8 + $0x198] sm:$0xff]
    %v248 = vld [vmem:[#allocation8 + $0x1a0] sm:$0xff]
    %v249 = vld [vmem:[#allocation8 + $0x1a8] sm:$0xff]
    %v250 = vld [vmem:[#allocation8 + $0x1b0] sm:$0xff]
    %v251 = vld [vmem:[#allocation8 + $0x1b8] sm:$0xff]
    %v252 = vld [vmem:[#allocation8 + $0x1c0] sm:$0xff]
    %v253 = vld [vmem:[#allocation8 + $0x1c8] sm:$0xff]
    %v254 = vld [vmem:[#allocation8 + $0x1d0] sm:$0xff]
    %v255 = vld [vmem:[#allocation8 + $0x1d8] sm:$0xff]
    %v256 = vld [vmem:[#allocation8 + $0x1e0] sm:$0xff]
    %v257 = vld [vmem:[#allocation8 + $0x1e8] sm:$0xff]
    %v258 = vld [vmem:[#allocation8 + $0x1f0] sm:$0xff]
    %v259 = vld [vmem:[#allocation8 + $0x1f8] sm:$0xff]
    %v260 = vld [vmem:[#allocation8 + $0x200] sm:$0xff]
    %v261 = vld [vmem:[#allocation8 + $0x208] sm:$0xff]
    %v262 = vld [vmem:[#allocation8 + $0x210] sm:$0xff]
    %v263 = vld [vmem:[#allocation8 + $0x218] sm:$0xff]
    %v264 = vld [vmem:[#allocation8 + $0x220] sm:$0xff]
    %v265 = vld [vmem:[#allocation8 + $0x228] sm:$0xff]
    %v266 = vld [vmem:[#allocation8 + $0x230] sm:$0xff]
    %v267 = vld [vmem:[#allocation8 + $0x238] sm:$0xff]
    %v268 = vld [vmem:[#allocation8 + $0x240] sm:$0xff]
    %v269 = vld [vmem:[#allocation8 + $0x248] sm:$0xff]
    %v270 = vld [vmem:[#allocation8 + $0x250] sm:$0xff]
    %v271 = vld [vmem:[#allocation8 + $0x258] sm:$0xff]
    %v272 = vld [vmem:[#allocation8 + $0x260] sm:$0xff]
    %v273 = vld [vmem:[#allocation8 + $0x268] sm:$0xff]
    %v274 = vld [vmem:[#allocation8 + $0x270] sm:$0xff]
    %v275 = vld [vmem:[#allocation8 + $0x278] sm:$0xff]
    %v276 = vld [vmem:[#allocation8 + $0x280] sm:$0xff]
    %v277 = vld [vmem:[#allocation8 + $0x288] sm:$0xff]
    %v278 = vld [vmem:[#allocation8 + $0x290] sm:$0xff]
    %v279 = vld [vmem:[#allocation8 + $0x298] sm:$0xff]
    %v280 = vld [vmem:[#allocation8 + $0x2a0] sm:$0xff]
    %v281 = vld [vmem:[#allocation8 + $0x2a8] sm:$0xff]
    %v282 = vld [vmem:[#allocation8 + $0x2b0] sm:$0xff]
    %v283 = vld [vmem:[#allocation8 + $0x2b8] sm:$0xff]
    %v284 = vld [vmem:[#allocation8 + $0x2c0] sm:$0xff]
    %v285 = vld [vmem:[#allocation8 + $0x2c8] sm:$0xff]
    %v286 = vld [vmem:[#allocation8 + $0x2d0] sm:$0xff]
    %v287 = vld [vmem:[#allocation8 + $0x2d8] sm:$0xff]
    %v288 = vld [vmem:[#allocation8 + $0x2e0] sm:$0xff]
    %v289 = vld [vmem:[#allocation8 + $0x2e8] sm:$0xff]
    %v290 = vld [vmem:[#allocation8 + $0x2f0] sm:$0xff]
    %v291 = vld [vmem:[#allocation8 + $0x2f8] sm:$0xff]
    %v292 = vld [vmem:[#allocation8 + $0x300] sm:$0xff]
    %v293 = vld [vmem:[#allocation8 + $0x308] sm:$0xff]
    %v294 = vld [vmem:[#allocation8 + $0x310] sm:$0xff]
    %v295 = vld [vmem:[#allocation8 + $0x318] sm:$0xff]
    %v296 = vld [vmem:[#allocation8 + $0x320] sm:$0xff]
    %v297 = vld [vmem:[#allocation8 + $0x328] sm:$0xff]
    %v298 = vld [vmem:[#allocation8 + $0x330] sm:$0xff]
    %v299 = vld [vmem:[#allocation8 + $0x338] sm:$0xff]
    %v300 = vld [vmem:[#allocation8 + $0x340] sm:$0xff]
    %v301 = vld [vmem:[#allocation8 + $0x348] sm:$0xff]
    %v302 = vld [vmem:[#allocation8 + $0x350] sm:$0xff]
    %v303 = vld [vmem:[#allocation8 + $0x358] sm:$0xff]
    %v304 = vld [vmem:[#allocation8 + $0x360] sm:$0xff]
    %v305 = vld [vmem:[#allocation8 + $0x368] sm:$0xff]
    %v306 = vld [vmem:[#allocation8 + $0x370] sm:$0xff]
    %v307 = vld [vmem:[#allocation8 + $0x378] sm:$0xff]
    %v308 = vld [vmem:[#allocation8 + $0x380] sm:$0xff]
    %v309 = vld [vmem:[#allocation8 + $0x388] sm:$0xff]
    %v310 = vld [vmem:[#allocation8 + $0x390] sm:$0xff]
    %v311 = vld [vmem:[#allocation8 + $0x398] sm:$0xff]
    %v312 = vld [vmem:[#allocation8 + $0x3a0] sm:$0xff]
    %v313 = vld [vmem:[#allocation8 + $0x3a8] sm:$0xff]
    %v314 = vld [vmem:[#allocation8 + $0x3b0] sm:$0xff]
    %v315 = vld [vmem:[#allocation8 + $0x3b8] sm:$0xff]
    %v316 = vld [vmem:[#allocation8 + $0x3c0] sm:$0xff]
    %v317 = vld [vmem:[#allocation8 + $0x3c8] sm:$0xff]
    %v318 = vld [vmem:[#allocation8 + $0x3d0] sm:$0xff]
    %v319 = vld [vmem:[#allocation8 + $0x3d8] sm:$0xff]
    %v320 = vld [vmem:[#allocation8 + $0x3e0] sm:$0xff]
    %v321 = vld [vmem:[#allocation8 + $0x3e8] sm:$0xff]
    %v322 = vld [vmem:[#allocation8 + $0x3f0] sm:$0xff]
    %v323 = vld [vmem:[#allocation8 + $0x3f8] sm:$0xff]
    %325 = vset.pattern.permute.xlu0 0
    %326 = vperm.xlu0 %325, %v67
    %v327 = vpop.permute.xlu0 %326
    %v330 = vcombine.high %v66, %v66
    %332 = vmatprep.subr.mxu0 %v69
    %333 = vmatpush1.msra.mxu0 %v68
    %334 = vmatprep.subr.mxu0 %v73
    %335 = vmatpush1.msra.mxu0 %v72
    %336 = vmatprep.subr.mxu0 %v77
    %337 = vmatpush1.msra.mxu0 %v76
    %338 = vmatprep.subr.mxu0 %v81
    %339 = vmatpush1.msra.mxu0 %v80
    %340 = vmatprep.subr.mxu0 %v85
    %341 = vmatpush1.msra.mxu0 %v84
    %342 = vmatprep.subr.mxu0 %v89
    %343 = vmatpush1.msra.mxu0 %v88
    %344 = vmatprep.subr.mxu0 %v93
    %345 = vmatpush1.msra.mxu0 %v92
    %346 = vmatprep.subr.mxu0 %v97
    %347 = vmatpush1.msra.mxu0 %v96
    %348 = vmatprep.subr.mxu0 %v101
    %349 = vmatpush1.msra.mxu0 %v100
    %350 = vmatprep.subr.mxu0 %v105
    %351 = vmatpush1.msra.mxu0 %v104
    %352 = vmatprep.subr.mxu0 %v109
    %353 = vmatpush1.msra.mxu0 %v108
    %354 = vmatprep.subr.mxu0 %v113
    %355 = vmatpush1.msra.mxu0 %v112
    %356 = vmatprep.subr.mxu0 %v117
    %357 = vmatpush1.msra.mxu0 %v116
    %358 = vmatprep.subr.mxu0 %v121
    %359 = vmatpush1.msra.mxu0 %v120
    %360 = vmatprep.subr.mxu0 %v125
    %361 = vmatpush1.msra.mxu0 %v124
    %362 = vmatprep.subr.mxu0 %v129
    %363 = vmatpush1.msra.mxu0 %v128
    %364 = vmatprep.subr.mxu0 %v133
    %365 = vmatpush1.msra.mxu0 %v132
    %366 = vmatprep.subr.mxu0 %v137
    %367 = vmatpush1.msra.mxu0 %v136
    %368 = vmatprep.subr.mxu0 %v141
    %369 = vmatpush1.msra.mxu0 %v140
    %370 = vmatprep.subr.mxu0 %v145
    %371 = vmatpush1.msra.mxu0 %v144
    %372 = vmatprep.subr.mxu0 %v149
    %373 = vmatpush1.msra.mxu0 %v148
    %374 = vmatprep.subr.mxu0 %v153
    %375 = vmatpush1.msra.mxu0 %v152
    %376 = vmatprep.subr.mxu0 %v157
    %377 = vmatpush1.msra.mxu0 %v156
    %378 = vmatprep.subr.mxu0 %v161
    %379 = vmatpush1.msra.mxu0 %v160
    %380 = vmatprep.subr.mxu0 %v165
    %381 = vmatpush1.msra.mxu0 %v164
    %382 = vmatprep.subr.mxu0 %v169
    %383 = vmatpush1.msra.mxu0 %v168
    %384 = vmatprep.subr.mxu0 %v173
    %385 = vmatpush1.msra.mxu0 %v172
    %386 = vmatprep.subr.mxu0 %v177
    %387 = vmatpush1.msra.mxu0 %v176
    %388 = vmatprep.subr.mxu0 %v181
    %389 = vmatpush1.msra.mxu0 %v180
    %390 = vmatprep.subr.mxu0 %v185
    %391 = vmatpush1.msra.mxu0 %v184
    %392 = vmatprep.subr.mxu0 %v189
    %393 = vmatpush1.msra.mxu0 %v188
    %394 = vmatprep.subr.mxu0 %v193
    %395 = vmatpush1.msra.mxu0 %v192
    %396 = vmatprep.mubr.f32.mxu0 %v330
    %397 = vmatmul.mubr.f32.gmra.mrb[0].mxu0 %v66
    %v398 = vpop.f32.mrb[0].mxu0
    %v399 = vadd.f32 %v327, %v398
    %v400 = vpop.f32.mrb[0].mxu0
    %v401 = vadd.f32 %v327, %v400
    %402 = vdwg.mxu0
    %403 = vmatprep.subr.mxu0 %v71
    %404 = vmatpush1.msra.mxu0 %v70
    %405 = vmatprep.subr.mxu0 %v75
    %406 = vmatpush1.msra.mxu0 %v74
    %407 = vmatprep.subr.mxu0 %v79
    %408 = vmatpush1.msra.mxu0 %v78
    %409 = vmatprep.subr.mxu0 %v83
    %410 = vmatpush1.msra.mxu0 %v82
    %411 = vmatprep.subr.mxu0 %v87
    %412 = vmatpush1.msra.mxu0 %v86
    %413 = vmatprep.subr.mxu0 %v91
    %414 = vmatpush1.msra.mxu0 %v90
    %415 = vmatprep.subr.mxu0 %v95
    %416 = vmatpush1.msra.mxu0 %v94
    %417 = vmatprep.subr.mxu0 %v99
    %418 = vmatpush1.msra.mxu0 %v98
    %419 = vmatprep.subr.mxu0 %v103
    %420 = vmatpush1.msra.mxu0 %v102
    %421 = vmatprep.subr.mxu0 %v107
    %422 = vmatpush1.msra.mxu0 %v106
    %423 = vmatprep.subr.mxu0 %v111
    %424 = vmatpush1.msra.mxu0 %v110
    %425 = vmatprep.subr.mxu0 %v115
    %426 = vmatpush1.msra.mxu0 %v114
    %427 = vmatprep.subr.mxu0 %v119
    %428 = vmatpush1.msra.mxu0 %v118
    %429 = vmatprep.subr.mxu0 %v123
    %430 = vmatpush1.msra.mxu0 %v122
    %431 = vmatprep.subr.mxu0 %v127
    %432 = vmatpush1.msra.mxu0 %v126
    %433 = vmatprep.subr.mxu0 %v131
    %434 = vmatpush1.msra.mxu0 %v130
    %435 = vmatprep.subr.mxu0 %v135
    %436 = vmatpush1.msra.mxu0 %v134
    %437 = vmatprep.subr.mxu0 %v139
    %438 = vmatpush1.msra.mxu0 %v138
    %439 = vmatprep.subr.mxu0 %v143
    %440 = vmatpush1.msra.mxu0 %v142
    %441 = vmatprep.subr.mxu0 %v147
    %442 = vmatpush1.msra.mxu0 %v146
    %443 = vmatprep.subr.mxu0 %v151
    %444 = vmatpush1.msra.mxu0 %v150
    %445 = vmatprep.subr.mxu0 %v155
    %446 = vmatpush1.msra.mxu0 %v154
    %447 = vmatprep.subr.mxu0 %v159
    %448 = vmatpush1.msra.mxu0 %v158
    %449 = vmatprep.subr.mxu0 %v163
    %450 = vmatpush1.msra.mxu0 %v162
    %451 = vmatprep.subr.mxu0 %v167
    %452 = vmatpush1.msra.mxu0 %v166
    %453 = vmatprep.subr.mxu0 %v171
    %454 = vmatpush1.msra.mxu0 %v170
    %455 = vmatprep.subr.mxu0 %v175
    %456 = vmatpush1.msra.mxu0 %v174
    %457 = vmatprep.subr.mxu0 %v179
    %458 = vmatpush1.msra.mxu0 %v178
    %459 = vmatprep.subr.mxu0 %v183
    %460 = vmatpush1.msra.mxu0 %v182
    %461 = vmatprep.subr.mxu0 %v187
    %462 = vmatpush1.msra.mxu0 %v186
    %463 = vmatprep.subr.mxu0 %v191
    %464 = vmatpush1.msra.mxu0 %v190
    %465 = vmatprep.subr.mxu0 %v195
    %466 = vmatpush1.msra.mxu0 %v194
    %467 = vmatprep.mubr.f32.mxu0 %v330
    %468 = vmatmul.mubr.f32.gmra.mrb[0].mxu0 %v66
    %v469 = vpop.f32.mrb[0].mxu0
    %v470 = vadd.f32 %v327, %v469
    %v471 = vpop.f32.mrb[0].mxu0
    %v472 = vadd.f32 %v327, %v471
    %473 = vdwg.mxu0
    %474 = vmatprep.subr.mxu0 %v197
    %475 = vmatpush1.msra.mxu0 %v196
    %476 = vmatprep.subr.mxu0 %v201
    %477 = vmatpush1.msra.mxu0 %v200
    %478 = vmatprep.subr.mxu0 %v205
    %479 = vmatpush1.msra.mxu0 %v204
    %480 = vmatprep.subr.mxu0 %v209
    %481 = vmatpush1.msra.mxu0 %v208
    %482 = vmatprep.subr.mxu0 %v213
    %483 = vmatpush1.msra.mxu0 %v212
    %484 = vmatprep.subr.mxu0 %v217
    %485 = vmatpush1.msra.mxu0 %v216
    %486 = vmatprep.subr.mxu0 %v221
    %487 = vmatpush1.msra.mxu0 %v220
    %488 = vmatprep.subr.mxu0 %v225
    %489 = vmatpush1.msra.mxu0 %v224
    %490 = vmatprep.subr.mxu0 %v229
    %491 = vmatpush1.msra.mxu0 %v228
    %492 = vmatprep.subr.mxu0 %v233
    %493 = vmatpush1.msra.mxu0 %v232
    %494 = vmatprep.subr.mxu0 %v237
    %495 = vmatpush1.msra.mxu0 %v236
    %496 = vmatprep.subr.mxu0 %v241
    %497 = vmatpush1.msra.mxu0 %v240
    %498 = vmatprep.subr.mxu0 %v245
    %499 = vmatpush1.msra.mxu0 %v244
    %500 = vmatprep.subr.mxu0 %v249
    %501 = vmatpush1.msra.mxu0 %v248
    %502 = vmatprep.subr.mxu0 %v253
    %503 = vmatpush1.msra.mxu0 %v252
    %504 = vmatprep.subr.mxu0 %v257
    %505 = vmatpush1.msra.mxu0 %v256
    %506 = vmatprep.subr.mxu0 %v261
    %507 = vmatpush1.msra.mxu0 %v260
    %508 = vmatprep.subr.mxu0 %v265
    %509 = vmatpush1.msra.mxu0 %v264
    %510 = vmatprep.subr.mxu0 %v269
    %511 = vmatpush1.msra.mxu0 %v268
    %512 = vmatprep.subr.mxu0 %v273
    %513 = vmatpush1.msra.mxu0 %v272
    %514 = vmatprep.subr.mxu0 %v277
    %515 = vmatpush1.msra.mxu0 %v276
    %516 = vmatprep.subr.mxu0 %v281
    %517 = vmatpush1.msra.mxu0 %v280
    %518 = vmatprep.subr.mxu0 %v285
    %519 = vmatpush1.msra.mxu0 %v284
    %520 = vmatprep.subr.mxu0 %v289
    %521 = vmatpush1.msra.mxu0 %v288
    %522 = vmatprep.subr.mxu0 %v293
    %523 = vmatpush1.msra.mxu0 %v292
    %524 = vmatprep.subr.mxu0 %v297
    %525 = vmatpush1.msra.mxu0 %v296
    %526 = vmatprep.subr.mxu0 %v301
    %527 = vmatpush1.msra.mxu0 %v300
    %528 = vmatprep.subr.mxu0 %v305
    %529 = vmatpush1.msra.mxu0 %v304
    %530 = vmatprep.subr.mxu0 %v309
    %531 = vmatpush1.msra.mxu0 %v308
    %532 = vmatprep.subr.mxu0 %v313
    %533 = vmatpush1.msra.mxu0 %v312
    %534 = vmatprep.subr.mxu0 %v317
    %535 = vmatpush1.msra.mxu0 %v316
    %536 = vmatprep.subr.mxu0 %v321
    %537 = vmatpush1.msra.mxu0 %v320
    %538 = vmatprep.mubr.f32.mxu0 %v330
    %539 = vmatmul.mubr.f32.gmra.mrb[0].mxu0 %v66
    %v540 = vpop.f32.mrb[0].mxu0
    %v541 = vadd.f32 %v327, %v540
    %v542 = vpop.f32.mrb[0].mxu0
    %v543 = vadd.f32 %v327, %v542
    %544 = vdwg.mxu0
    %545 = vmatprep.subr.mxu0 %v199
    %546 = vmatpush1.msra.mxu0 %v198
    %547 = vmatprep.subr.mxu0 %v203
    %548 = vmatpush1.msra.mxu0 %v202
    %549 = vmatprep.subr.mxu0 %v207
    %550 = vmatpush1.msra.mxu0 %v206
    %551 = vmatprep.subr.mxu0 %v211
    %552 = vmatpush1.msra.mxu0 %v210
    %553 = vmatprep.subr.mxu0 %v215
    %554 = vmatpush1.msra.mxu0 %v214
    %555 = vmatprep.subr.mxu0 %v219
    %556 = vmatpush1.msra.mxu0 %v218
    %557 = vmatprep.subr.mxu0 %v223
    %558 = vmatpush1.msra.mxu0 %v222
    %559 = vmatprep.subr.mxu0 %v227
    %560 = vmatpush1.msra.mxu0 %v226
    %561 = vmatprep.subr.mxu0 %v231
    %562 = vmatpush1.msra.mxu0 %v230
    %563 = vmatprep.subr.mxu0 %v235
    %564 = vmatpush1.msra.mxu0 %v234
    %565 = vmatprep.subr.mxu0 %v239
    %566 = vmatpush1.msra.mxu0 %v238
    %567 = vmatprep.subr.mxu0 %v243
    %568 = vmatpush1.msra.mxu0 %v242
    %569 = vmatprep.subr.mxu0 %v247
    %570 = vmatpush1.msra.mxu0 %v246
    %571 = vmatprep.subr.mxu0 %v251
    %572 = vmatpush1.msra.mxu0 %v250
    %573 = vmatprep.subr.mxu0 %v255
    %574 = vmatpush1.msra.mxu0 %v254
    %575 = vmatprep.subr.mxu0 %v259
    %576 = vmatpush1.msra.mxu0 %v258
    %577 = vmatprep.subr.mxu0 %v263
    %578 = vmatpush1.msra.mxu0 %v262
    %579 = vmatprep.subr.mxu0 %v267
    %580 = vmatpush1.msra.mxu0 %v266
    %581 = vmatprep.subr.mxu0 %v271
    %582 = vmatpush1.msra.mxu0 %v270
    %583 = vmatprep.subr.mxu0 %v275
    %584 = vmatpush1.msra.mxu0 %v274
    %585 = vmatprep.subr.mxu0 %v279
    %586 = vmatpush1.msra.mxu0 %v278
    %587 = vmatprep.subr.mxu0 %v283
    %588 = vmatpush1.msra.mxu0 %v282
    %589 = vmatprep.subr.mxu0 %v287
    %590 = vmatpush1.msra.mxu0 %v286
    %591 = vmatprep.subr.mxu0 %v291
    %592 = vmatpush1.msra.mxu0 %v290
    %593 = vmatprep.subr.mxu0 %v295
    %594 = vmatpush1.msra.mxu0 %v294
    %595 = vmatprep.subr.mxu0 %v299
    %596 = vmatpush1.msra.mxu0 %v298
    %597 = vmatprep.subr.mxu0 %v303
    %598 = vmatpush1.msra.mxu0 %v302
    %599 = vmatprep.subr.mxu0 %v307
    %600 = vmatpush1.msra.mxu0 %v306
    %601 = vmatprep.subr.mxu0 %v311
    %602 = vmatpush1.msra.mxu0 %v310
    %603 = vmatprep.subr.mxu0 %v315
    %604 = vmatpush1.msra.mxu0 %v314
    %605 = vmatprep.subr.mxu0 %v319
    %606 = vmatpush1.msra.mxu0 %v318
    %607 = vmatprep.subr.mxu0 %v323
    %608 = vmatpush1.msra.mxu0 %v322
    %609 = vmatprep.mubr.f32.mxu0 %v330
    %610 = vmatmul.mubr.f32.gmra.mrb[0].mxu0 %v66
    %v611 = vpop.f32.mrb[0].mxu0
    %v612 = vadd.f32 %v327, %v611
    %v613 = vpop.f32.mrb[0].mxu0
    %v614 = vadd.f32 %v327, %v613
    %615 = vdwg.mxu0
    %v616 = vmul.f32 %v399, %v399
    %v617 = vmul.f32 %v401, %v401
    %v618 = vmul.f32 %v470, %v470
    %v619 = vmul.f32 %v472, %v472
    %vm620 = vcmask 1042432
    %v621 = vsel %vm620, %v616, 0.0
    %v622 = vrot.slane %v621, 4
    %v623 = vadd.f32 %v621, %v622
    %v624 = vrot.slane %v623, 2
    %v625 = vadd.f32 %v623, %v624
    %v626 = vrot.slane %v625, 1
    %v627 = vadd.f32 %v625, %v626
    %v628 = vsel %vm620, %v617, 0.0
    %v629 = vrot.slane %v628, 4
    %v630 = vadd.f32 %v628, %v629
    %v631 = vrot.slane %v630, 2
    %v632 = vadd.f32 %v630, %v631
    %v633 = vrot.slane %v632, 1
    %v634 = vadd.f32 %v632, %v633
    %v635 = vsel %vm620, %v618, 0.0
    %v636 = vrot.slane %v635, 4
    %v637 = vadd.f32 %v635, %v636
    %v638 = vrot.slane %v637, 2
    %v639 = vadd.f32 %v637, %v638
    %v640 = vrot.slane %v639, 1
    %v641 = vadd.f32 %v639, %v640
    %v642 = vsel %vm620, %v619, 0.0
    %v643 = vrot.slane %v642, 4
    %v644 = vadd.f32 %v642, %v643
    %v645 = vrot.slane %v644, 2
    %v646 = vadd.f32 %v644, %v645
    %v647 = vrot.slane %v646, 1
    %v648 = vadd.f32 %v646, %v647
    %v649 = vrsqrt.pop %v627
    %v650 = vmul.f32 %v627, %v649
    %vm651 = vcmp.eq.f32.partialorder %v627, inf
    %v652 = vsel %vm651, %v627, %v650
    %vm653 = vcmp.eq.f32.partialorder %v627, 0.0
    %v654 = vand.u32 %v627, 2147483648
    %v655 = vsel %vm653, %v654, %v652
    %v656 = vrsqrt.pop %v634
    %v657 = vmul.f32 %v634, %v656
    %vm658 = vcmp.eq.f32.partialorder %v634, inf
    %v659 = vsel %vm658, %v634, %v657
    %vm660 = vcmp.eq.f32.partialorder %v634, 0.0
    %v661 = vand.u32 %v634, 2147483648
    %v662 = vsel %vm660, %v661, %v659
    %v663 = vrsqrt.pop %v641
    %v664 = vmul.f32 %v641, %v663
    %vm665 = vcmp.eq.f32.partialorder %v641, inf
    %v666 = vsel %vm665, %v641, %v664
    %vm667 = vcmp.eq.f32.partialorder %v641, 0.0
    %v668 = vand.u32 %v641, 2147483648
    %v669 = vsel %vm667, %v668, %v666
    %v670 = vrsqrt.pop %v648
    %v671 = vmul.f32 %v648, %v670
    %vm672 = vcmp.eq.f32.partialorder %v648, inf
    %v673 = vsel %vm672, %v648, %v671
    %vm674 = vcmp.eq.f32.partialorder %v648, 0.0
    %v675 = vand.u32 %v648, 2147483648
    %v676 = vsel %vm674, %v675, %v673
    %v677 = vadd.f32 %v655, 1e-10
    %v678 = vadd.f32 %v662, 1e-10
    %v679 = vadd.f32 %v669, 1e-10
    %v680 = vadd.f32 %v676, 1e-10
    %v681 = vrcp.pop %v677
    %v682 = vmul.f32 %v399, %v681
    %v683 = vrcp.pop %v678
    %v684 = vmul.f32 %v401, %v683
    %v685 = vrcp.pop %v679
    %v686 = vmul.f32 %v470, %v685
    %v687 = vrcp.pop %v680
    %v688 = vmul.f32 %v472, %v687
    %v689 = vmul.f32 %v541, %v541
    %v690 = vmul.f32 %v543, %v543
    %v691 = vmul.f32 %v612, %v612
    %v692 = vmul.f32 %v614, %v614
    %v693 = vsel %vm620, %v689, 0.0
    %v694 = vrot.slane %v693, 4
    %v695 = vadd.f32 %v693, %v694
    %v696 = vrot.slane %v695, 2
    %v697 = vadd.f32 %v695, %v696
    %v698 = vrot.slane %v697, 1
    %v699 = vadd.f32 %v697, %v698
    %v700 = vsel %vm620, %v690, 0.0
    %v701 = vrot.slane %v700, 4
    %v702 = vadd.f32 %v700, %v701
    %v703 = vrot.slane %v702, 2
    %v704 = vadd.f32 %v702, %v703
    %v705 = vrot.slane %v704, 1
    %v706 = vadd.f32 %v704, %v705
    %v707 = vsel %vm620, %v691, 0.0
    %v708 = vrot.slane %v707, 4
    %v709 = vadd.f32 %v707, %v708
    %v710 = vrot.slane %v709, 2
    %v711 = vadd.f32 %v709, %v710
    %v712 = vrot.slane %v711, 1
    %v713 = vadd.f32 %v711, %v712
    %v714 = vsel %vm620, %v692, 0.0
    %v715 = vrot.slane %v714, 4
    %v716 = vadd.f32 %v714, %v715
    %v717 = vrot.slane %v716, 2
    %v718 = vadd.f32 %v716, %v717
    %v719 = vrot.slane %v718, 1
    %v720 = vadd.f32 %v718, %v719
    %v721 = vrsqrt.pop %v699
    %v722 = vmul.f32 %v699, %v721
    %vm723 = vcmp.eq.f32.partialorder %v699, inf
    %v724 = vsel %vm723, %v699, %v722
    %vm725 = vcmp.eq.f32.partialorder %v699, 0.0
    %v726 = vand.u32 %v699, 2147483648
    %v727 = vsel %vm725, %v726, %v724
    %v728 = vrsqrt.pop %v706
    %v729 = vmul.f32 %v706, %v728
    %vm730 = vcmp.eq.f32.partialorder %v706, inf
    %v731 = vsel %vm730, %v706, %v729
    %vm732 = vcmp.eq.f32.partialorder %v706, 0.0
    %v733 = vand.u32 %v706, 2147483648
    %v734 = vsel %vm732, %v733, %v731
    %v735 = vrsqrt.pop %v713
    %v736 = vmul.f32 %v713, %v735
    %vm737 = vcmp.eq.f32.partialorder %v713, inf
    %v738 = vsel %vm737, %v713, %v736
    %vm739 = vcmp.eq.f32.partialorder %v713, 0.0
    %v740 = vand.u32 %v713, 2147483648
    %v741 = vsel %vm739, %v740, %v738
    %v742 = vrsqrt.pop %v720
    %v743 = vmul.f32 %v720, %v742
    %vm744 = vcmp.eq.f32.partialorder %v720, inf
    %v745 = vsel %vm744, %v720, %v743
    %vm746 = vcmp.eq.f32.partialorder %v720, 0.0
    %v747 = vand.u32 %v720, 2147483648
    %v748 = vsel %vm746, %v747, %v745
    %v749 = vadd.f32 %v727, 1e-10
    %v750 = vadd.f32 %v734, 1e-10
    %v751 = vadd.f32 %v741, 1e-10
    %v752 = vadd.f32 %v748, 1e-10
    %v753 = vrcp.pop %v749
    %v754 = vmul.f32 %v541, %v753
    %v755 = vrcp.pop %v750
    %v756 = vmul.f32 %v543, %v755
    %v757 = vrcp.pop %v751
    %v758 = vmul.f32 %v612, %v757
    %v759 = vrcp.pop %v752
    %v760 = vmul.f32 %v614, %v759
    %v761 = vsub.f32 %v682, %v754
    %v762 = vsub.f32 %v684, %v756
    %v763 = vsub.f32 %v686, %v758
    %v764 = vsub.f32 %v688, %v760
    %v765 = vmul.f32 %v761, %v761
    %v766 = vmul.f32 %v762, %v762
    %v767 = vmul.f32 %v763, %v763
    %v768 = vmul.f32 %v764, %v764
    %v769 = vsel %vm620, %v765, 0.0
    %v770 = vrot.slane %v769, 4
    %v771 = vadd.f32 %v769, %v770
    %v772 = vrot.slane %v771, 2
    %v773 = vadd.f32 %v771, %v772
    %v774 = vrot.slane %v773, 1
    %v775 = vadd.f32 %v773, %v774
    %v776 = vsel %vm620, %v766, 0.0
    %v777 = vrot.slane %v776, 4
    %v778 = vadd.f32 %v776, %v777
    %v779 = vrot.slane %v778, 2
    %v780 = vadd.f32 %v778, %v779
    %v781 = vrot.slane %v780, 1
    %v782 = vadd.f32 %v780, %v781
    %v783 = vsel %vm620, %v767, 0.0
    %v784 = vrot.slane %v783, 4
    %v785 = vadd.f32 %v783, %v784
    %v786 = vrot.slane %v785, 2
    %v787 = vadd.f32 %v785, %v786
    %v788 = vrot.slane %v787, 1
    %v789 = vadd.f32 %v787, %v788
    %v790 = vsel %vm620, %v768, 0.0
    %v791 = vrot.slane %v790, 4
    %v792 = vadd.f32 %v790, %v791
    %v793 = vrot.slane %v792, 2
    %v794 = vadd.f32 %v792, %v793
    %v795 = vrot.slane %v794, 1
    %v796 = vadd.f32 %v794, %v795
    %s797 = smul.u32 0, 512
    %v798 = vlaneseq
    %v799 = vand.u32 %v798, 127
    %v800 = vadd.s32 %v799, 128
    %v801 = vadd.s32 %v799, 256
    %v802 = vadd.s32 %v799, 384
    %v803 = vstv %s797
    %v804 = vadd.s32 %v803, %v799
    %v805 = vadd.s32 %v803, %v800
    %v806 = vadd.s32 %v803, %v801
    %v807 = vadd.s32 %v803, %v802
    %v808 = vld [vmem:[#allocation2] sm:$0xf]
    %vm809 = vcmp.lt.s32.totalorder %v804, 512
    %vm810 = vcmp.lt.s32.totalorder %v805, 512
    %vm811 = vcmp.lt.s32.totalorder %v806, 512
    %vm812 = vcmp.lt.s32.totalorder %v807, 512
    %v813 = vsel %vm809, %v775, 0.0
    %v814 = vsel %vm810, %v782, 0.0
    %v815 = vsel %vm811, %v789, 0.0
    %v816 = vsel %vm812, %v796, 0.0
    %v821 = vcombine.low %v813, %v814
    %v822 = vcombine.low %v815, %v816
    %v824 = vunpack.c.l.s4 1966171168
    %v825 = vunpack.c.0.s8 %v824
    %v826 = vlaneseq
    %v827 = vshrl.u32 %v826, 7
    %v828 = vsub.s32 %v825, %v827
    %v829 = vrot.slane %v821, %v828
    %v831 = vunpack.c.l.s4 1966171168
    %v832 = vunpack.c.0.s8 %v831
    %v833 = vlaneseq
    %v834 = vshrl.u32 %v833, 7
    %v835 = vsub.s32 %v832, %v834
    %v836 = vrot.slane %v822, %v835
    %v837 = vcombine.low %v829, %v836
    %v839 = vunpack.c.l.s4 1966171168
    %v840 = vunpack.c.0.s8 %v839
    %v841 = vlaneseq
    %v842 = vshrl.u32 %v841, 7
    %v843 = vsub.s32 %v840, %v842
    %v844 = vrot.slane %v837, %v843
    %v846 = vadd.f32 %v808, %v844
    %v847 = vlaneseq
    %vm848 = vcmp.ge.s32.totalorder %v847, 0
    %vm849 = vcmp.lt.s32.totalorder %v847, 512
    %vm850 = vmand %vm848, %vm849
    %851 = vst.msk [vmem:[#allocation2] sm:$0xf] %vm850, %v846
    // Predicated region
    $region34: #{tpu_custom_call.1} parent=1 // pred_check
      %p852 = pneg %p57
    $region35: #{tpu_custom_call.1} parent=1 // pred_check_branch
      %854 = sbr.rel (%p852) target = $region37
    $region36: #{tpu_custom_call.1} parent=1 // pred_region
      %v855 = vld [vmem:[#allocation2] sm:$0xf]
      %v857 = vlaneseq
      %v858 = vshrl.u32 %v857, 7
      %v859 = vsub.s32 0, %v858
      %v860 = vrot.slane %v855, %v859
      %v861 = vlaneseq
      %v862 = vshrl.u32 %v861, 7
      %v863 = vsub.s32 1, %v862
      %v864 = vrot.slane %v855, %v863
      %v865 = vlaneseq
      %v866 = vshrl.u32 %v865, 7
      %v867 = vsub.s32 2, %v866
      %v868 = vrot.slane %v855, %v867
      %v869 = vlaneseq
      %v870 = vshrl.u32 %v869, 7
      %v871 = vsub.s32 3, %v870
      %v872 = vrot.slane %v855, %v871
      %vm877 = vcmask 1040384
      %v878 = vsel %vm877, %v860, 0.0
      %v879 = vsel %vm877, %v864, 0.0
      %v880 = vadd.f32 %v878, %v879
      %v881 = vsel %vm877, %v868, 0.0
      %v882 = vadd.f32 %v880, %v881
      %v883 = vsel %vm877, %v872, 0.0
      %v884 = vadd.f32 %v882, %v883
      %885 = vadd.xlane.f32.xlu0 %v884
      %v886 = vpop.xlane.xlu0 %885
      %v887 = vrot.slane %v886, 4
      %v888 = vadd.f32 %v886, %v887
      %v889 = vrot.slane %v888, 2
      %v890 = vadd.f32 %v888, %v889
      %v891 = vrot.slane %v890, 1
      %v892 = vadd.f32 %v890, %v891
      %s893 = vtos %v892
      %s894 = smul.f32 %s893, 0.001953125
      %s895 = scalar_lea.smem [#allocation9], 0
      %896 = sst [smem:[%s895]] %s894
    $region37: #{tpu_custom_call.1} parent=1 // pred_fallthru
      _
    // Predicated region
    $region38: #{tpu_custom_call.1} parent=1 // pred_check
      _
    $region39: #{tpu_custom_call.1} parent=1 // pred_check_branch
      %898 = sbr.rel (0) target = $region41
    $region40: #{tpu_custom_call.1} parent=1 // pred_region
      %s900 = ssub.s32 16, 16
      %901 = vsyncadd [#allocation5], %s900
      %904 = dma.smem_to_hbm [#allocation9], 16, %s4, [#allocation5]
    $region41: #{tpu_custom_call.1} parent=1 // pred_fallthru
      _
    // Predicated region
    $region42: #{tpu_custom_call.1} parent=1 // pred_check
      _
    $region43: #{tpu_custom_call.1} parent=1 // pred_check_branch
      %906 = sbr.rel (0) target = $region45
    $region44: #{tpu_custom_call.1} parent=1 // pred_region
      %907 = dma.done [#allocation5], 16
    $region45: #{tpu_custom_call.1} parent=1 // pred_fallthru
      _
    %908 = sfence
    %909 = vsyncpa [#allocation4], 1
    %910 = vsyncpa [#allocation7], 1
    %911 = vsyncpa [#allocation5], 1

</llo_original>
